<compile_context>
chip_gen: v6e
topology: v6e:2x2x1
jax: 0.10.0
libtpu: 0.0.40
codegen_flags: <defaults>
</compile_context>

<pallas_src>
import jax
import jax.numpy as jnp
from jax.experimental import pallas as pl
from jax.experimental.pallas import tpu as pltpu


def _outconv_kernel(x_ref, w_ref, b_ref, o_ref):
    # x_ref: (1, Cin, t_hw)   -- spatial on lanes
    # w_ref: (Cout, Cin)
    # b_ref: (Cout, 1)        -- broadcast over lanes
    # o_ref: (1, Cout, t_hw)  -- lane-dense output
    acc = jnp.dot(w_ref[...], x_ref[0], preferred_element_type=jnp.float32)
    o_ref[0] = (acc + b_ref[...]).astype(o_ref.dtype)


def out_conv(x_nchw, weight, bias, *, t_hw=1024):
    """1x1 conv (final mUNet layer).

    x_nchw: (N, Cin, H, W), weight: (Cout, Cin, 1, 1), bias: (Cout,).
    Returns (N, Cout, H, W).
    """
    N, Cin, H, W = x_nchw.shape
    Cout = weight.shape[0]
    HW = H * W

    # Cheap reshapes only — no layout transpose, spatial stays contiguous.
    x_rows = x_nchw.reshape(N, Cin, HW)     # (N, Cin, HW)
    w_mat = weight.reshape(Cout, Cin)       # (Cout, Cin)
    b_col = bias.reshape(Cout, 1)           # (Cout, 1)

    # Lane-dense spatial tile: multiple of 128, as large as useful (<= t_hw).
    hw_128 = ((HW + 127) // 128) * 128
    t = min(t_hw, hw_128)
    hw_pad = ((HW + t - 1) // t) * t
    if hw_pad != HW:
        x_rows = jnp.pad(x_rows, ((0, 0), (0, 0), (0, hw_pad - HW)))

    grid = (N, pl.cdiv(hw_pad, t))

    itemsize = x_nchw.dtype.itemsize
    cost = pl.CostEstimate(
        flops=2 * N * HW * Cin * Cout,
        transcendentals=0,
        bytes_accessed=(N * Cin * HW + N * Cout * HW) * itemsize
        + (Cout * Cin + Cout) * 4,
    )

    out = pl.pallas_call(
        _outconv_kernel,
        out_shape=jax.ShapeDtypeStruct((N, Cout, hw_pad), x_nchw.dtype),
        grid_spec=pltpu.PrefetchScalarGridSpec(
            num_scalar_prefetch=0,
            grid=grid,
            in_specs=[
                pl.BlockSpec((1, Cin, t), lambda n, j: (n, 0, j)),
                pl.BlockSpec((Cout, Cin), lambda n, j: (0, 0)),
                pl.BlockSpec((Cout, 1), lambda n, j: (0, 0)),
            ],
            out_specs=pl.BlockSpec((1, Cout, t), lambda n, j: (n, 0, j)),
        ),
        compiler_params=pltpu.CompilerParams(
            dimension_semantics=("parallel", "parallel"),
        ),
        cost_estimate=cost,
    )(x_rows, w_mat, b_col)

    # Drop spatial padding and restore NCHW.
    return out[:, :, :HW].reshape(N, Cout, H, W)


if __name__ == "__main__":
    key = jax.random.PRNGKey(0)
    kx, kw, kb = jax.random.split(key, 3)

    # Shapes matching mUNet's final layer: nn.Conv2d(32, 1, kernel_size=1).
    N, Cin, Cout, Hs, Ws = 2, 32, 1, 16, 16
    x = jax.random.normal(kx, (N, Cin, Hs, Ws), dtype=jnp.float32)
    weight = jax.random.normal(kw, (Cout, Cin, 1, 1), dtype=jnp.float32) * 0.1
    bias = jax.random.normal(kb, (Cout,), dtype=jnp.float32) * 0.1

    y = out_conv(x, weight, bias)
    y = jax.block_until_ready(y)

    # Correctness check against a plain-JAX reference of the 1x1 conv.
    ref = (
        jnp.einsum("nchw,oc->nohw", x, weight.reshape(Cout, Cin))
        + bias[None, :, None, None]
    )
    assert y.shape == (N, Cout, Hs, Ws)
    assert jnp.allclose(y, ref, atol=1e-5, rtol=1e-5)

    print("KERNEL_OK")
</pallas_src>

<mosaic_0001>
module attributes {stable_mosaic.version = 11 : i64} {
  func.func @_outconv_kernel(%arg0: i32, %arg1: i32, %arg2: memref<1x32x256xf32, #tpu.memory_space<vmem>>, %arg3: memref<1x32xf32, #tpu.memory_space<vmem>>, %arg4: memref<1x1xf32, #tpu.memory_space<vmem>>, %arg5: memref<1x1x256xf32, #tpu.memory_space<vmem>>) attributes {dimension_semantics = [#tpu.dimension_semantics<parallel>, #tpu.dimension_semantics<parallel>], iteration_bounds = array<i64: 2, 1>, scalar_prefetch = 0 : i64, scratch_operands = 0 : i64, tpu.core_type = #tpu.core_type<tc>, window_params = [{transform_indices = @transform_0, window_bounds = array<i64: 1, 32, 256>}, {pipeline_mode = #tpu.pipeline_mode<synchronous>, transform_indices = @transform_1, window_bounds = array<i64: 1, 32>}, {pipeline_mode = #tpu.pipeline_mode<synchronous>, transform_indices = @transform_2, window_bounds = array<i64: 1, 1>}, {transform_indices = @transform_3, window_bounds = array<i64: 1, 1, 256>}]} {
    %c0 = arith.constant 0 : index
    %c0_0 = arith.constant 0 : index
    %0 = vector.load %arg3[%c0, %c0_0] : memref<1x32xf32, #tpu.memory_space<vmem>>, vector<1x32xf32>
    %c0_1 = arith.constant 0 : index
    %c0_2 = arith.constant 0 : index
    %c0_3 = arith.constant 0 : index
    %1 = vector.load %arg2[%c0_1, %c0_2, %c0_3] : memref<1x32x256xf32, #tpu.memory_space<vmem>>, vector<1x32x256xf32>
    %2 = vector.shape_cast %1 : vector<1x32x256xf32> to vector<32x256xf32>
    %cst = arith.constant dense<0.000000e+00> : vector<1x256xf32>
    %3 = tpu.matmul %0, %2, %cst {dimension_numbers = #tpu.dot_dimension_numbers<[1], [0], [0], [1], [0, 0, 1, 1], [], []>} : vector<1x32xf32>, vector<32x256xf32>, vector<1x256xf32> -> vector<1x256xf32>
    %c0_4 = arith.constant 0 : index
    %c0_5 = arith.constant 0 : index
    %4 = vector.load %arg4[%c0_4, %c0_5] : memref<1x1xf32, #tpu.memory_space<vmem>>, vector<1x1xf32>
    %5 = vector.broadcast %4 : vector<1x1xf32> to vector<1x256xf32>
    %6 = arith.addf %3, %5 : vector<1x256xf32>
    %c0_6 = arith.constant 0 : index
    %c0_7 = arith.constant 0 : index
    %c0_8 = arith.constant 0 : index
    %7 = vector.load %arg5[%c0_6, %c0_7, %c0_8] : memref<1x1x256xf32, #tpu.memory_space<vmem>>, vector<1x1x256xf32>
    %8 = vector.shape_cast %7 : vector<1x1x256xf32> to vector<1x256xf32>
    %9 = vector.shape_cast %6 : vector<1x256xf32> to vector<1x1x256xf32>
    tpu.vector_store %arg5[%c0_6, %c0_7, %c0_8], %9 {strides = array<i32>} : memref<1x1x256xf32, #tpu.memory_space<vmem>>, vector<1x1x256xf32>,
    return
  }
  func.func @transform_0(%arg0: i32, %arg1: i32) -> (i32, i32, i32) {
    %c0_i32 = arith.constant 0 : i32
    %c0_i32_0 = arith.constant 0 : i32
    return %arg0, %c0_i32, %arg1 : i32, i32, i32
  }
  func.func @transform_1(%arg0: i32, %arg1: i32) -> (i32, i32) {
    %c0_i32 = arith.constant 0 : i32
    %c0_i32_0 = arith.constant 0 : i32
    %c0_i32_1 = arith.constant 0 : i32
    return %c0_i32, %c0_i32_0 : i32, i32
  }
  func.func @transform_2(%arg0: i32, %arg1: i32) -> (i32, i32) {
    %c0_i32 = arith.constant 0 : i32
    %c0_i32_0 = arith.constant 0 : i32
    %c0_i32_1 = arith.constant 0 : i32
    return %c0_i32, %c0_i32_0 : i32, i32
  }
  func.func @transform_3(%arg0: i32, %arg1: i32) -> (i32, i32, i32) {
    %c0_i32 = arith.constant 0 : i32
    %c0_i32_0 = arith.constant 0 : i32
    return %arg0, %c0_i32, %arg1 : i32, i32, i32
  }
}

</mosaic_0001>

<llo_original>
// kernel: tpu_custom_call.1
$region0: #{tpu_custom_call.1}
  #allocation0 [shape = 'u32[]', space=smem, size = 0x4, offset = 0x4, fixed_abs, tag = 'smem constant byte address 0x4 - core index']
  #allocation1 [shape = 'u32[144,128]{1,0:T(1,128)}', space=vmem, size = 0x12000, scoped, tag = 'internal scratch']
  #allocation2 [shape = 'f32[1,1]{1,0:T(1,128)S(1)}', space=vmem, size = 0x200, scoped, tag = 'scoped memory for tpu_custom_call.1']
  %s0 = inlined_call_operand.hbm [shape: f32[2,32,256], index: 0, kind: input, shape index: {}]
  %s1 = inlined_call_operand.vmem [shape: f32[1,32], index: 1, kind: input, shape index: {}]
  %s2 = inlined_call_operand.<no memory space> [shape: f32[1,1], index: 2, kind: input, shape index: {}]
  %s3 = inlined_call_operand.hbm [shape: f32[2,1,256], index: 3, kind: output, shape index: {}]
  %s4 = sld [smem:[#allocation0]]
  $region49: #{tpu_custom_call.1} parent=0
    _
  %s6 = ssub.s32 1, %s4
  %s7 = scalar_select 0, %s6, %s4
  %v8 = vstv %s2
  %9 = vst [vmem:[#allocation2] sm:$0x1] %v8
  $region1: #{tpu_custom_call.1} parent=0
    #allocation3 [shape = 'u8[65536]{0}', space=vmem, size = 0x10000, scoped, tag = 'input window, operand 0']
    #allocation4 [shape = 's32[2]{0}', space=sflag, size = 0x8, scoped, tag = 'scoped memory for tpu_custom_call.1']
    #allocation5 [shape = 's32[2]{0}', space=sflag, size = 0x8, scoped, tag = 'scoped memory for tpu_custom_call.1']
    #allocation6 [shape = 'u8[2048]{0}', space=vmem, size = 0x800, scoped, tag = 'output window, operand 0']
    %10 = vsyncpa [#allocation4], 0
    %s11 = scalar_lea.sflag [#allocation4], 1
    %12 = vsyncpa %s11, 0
    %13 = vsyncpa [#allocation5], 0
    %s14 = scalar_lea.sflag [#allocation5], 1
    %15 = vsyncpa %s14, 0
    loop: start=0, step=1, limit=4
    $region2: #{tpu_custom_call.1} parent=1 // loop_pre_header
      _
    $region3: #{tpu_custom_call.1} parent=1 // loop_header
      %s17 = sphi 0, %s21
      %p18 = scmp.ge.s32.totalorder %s17, 4
      %s24 = sphi 0, %s36
      %s25 = sphi 0, %s32
      %s26 = sphi 0, %s24
      %s27 = sphi 0, %s25
      %s28 = sphi 0, %s26
      %s29 = sphi 0, %s27
      %s41 = sphi 0, %s43
      %s44 = sphi 0, %s41
      %s45 = sphi 0, %s44
      %s61 = sphi 0, %s45
      %s65 = sphi 0, %s65
      %s67 = sphi 0, %s65
      %s68 = sphi 0, %s67
      %s82 = sphi 0, %s68
      %s86 = sphi 0, %s86
      %s88 = sphi 0, %s86
      %s89 = sphi 0, %s88
      %s103 = sphi 0, %s89
      %s111 = sphi 0, %s113
      %s114 = sphi 0, %s111
      %s115 = sphi 0, %s114
      %s131 = sphi 0, %s115
    $region4: #{tpu_custom_call.1} parent=1 // loop_header_branch
      %20 = sbr.rel (%p18) target = $region8
    $region5: #{tpu_custom_call.1} parent=1 // loop_body
      %s22 = ssub.s32 %s17, 1
      %s23 = ssub.s32 %s17, 2
      %s30 = sadd.s32 1, %s25
      %p31 = scmp.ge.s32.totalorder %s30, 1
      %s32 = scalar_select %p31, 0, %s30
      %s33 = sadd.s32 1, %s24
      %s34 = scalar_select %p31, %s33, %s24
      %p35 = scmp.ge.s32.totalorder %s34, 2
      %s36 = scalar_select %p35, 0, %s34
      %s37 = ssub.s32 %s24, %s36
      %s38 = ssub.s32 %s25, %s32
      %s39 = sor.u32 %s37, %s38
      %p40 = scmp.eq.s32.totalorder %s39, 0
      %s42 = sadd.s32 %s41, 1
      %s43 = scalar_select %p40, %s41, %s42
      %p46 = pneg %p40
      %p47 = scmp.eq.s32.totalorder %s17, 1
      %p48 = por %p46, %p47
      %p49 = scmp.ne.s32.totalorder %s41, %s44
      %p50 = scmp.eq.s32.totalorder %s17, 0
      %p51 = por %p49, %p50
      %p52 = scmp.ne.s32.totalorder %s41, %s44
      %p53 = scmp.eq.s32.totalorder %s22, 1
      %p54 = por %p52, %p53
      %p55 = scmp.ne.s32.totalorder %s44, %s45
      %p56 = scmp.eq.s32.totalorder %s22, 0
      %p57 = por %p55, %p56
      %p58 = scmp.ne.s32.totalorder %s44, %s45
      %p59 = scmp.eq.s32.totalorder %s23, 1
      %p60 = por %p58, %p59
      %p62 = scmp.ne.s32.totalorder %s45, %s61
      %p63 = scmp.eq.s32.totalorder %s23, 0
      %p64 = por %p62, %p63
      %s66 = sadd.s32 %s65, 1
      %p69 = scmp.eq.s32.totalorder %s17, 1
      %p70 = scmp.ne.s32.totalorder %s65, %s67
      %p71 = scmp.eq.s32.totalorder %s17, 0
      %p72 = por %p70, %p71
      %p73 = scmp.ne.s32.totalorder %s65, %s67
      %p74 = scmp.eq.s32.totalorder %s22, 1
      %p75 = por %p73, %p74
      %p76 = scmp.ne.s32.totalorder %s67, %s68
      %p77 = scmp.eq.s32.totalorder %s22, 0
      %p78 = por %p76, %p77
      %p79 = scmp.ne.s32.totalorder %s67, %s68
      %p80 = scmp.eq.s32.totalorder %s23, 1
      %p81 = por %p79, %p80
      %p83 = scmp.ne.s32.totalorder %s68, %s82
      %p84 = scmp.eq.s32.totalorder %s23, 0
      %p85 = por %p83, %p84
      %s87 = sadd.s32 %s86, 1
      %p90 = scmp.eq.s32.totalorder %s17, 1
      %p91 = scmp.ne.s32.totalorder %s86, %s88
      %p92 = scmp.eq.s32.totalorder %s17, 0
      %p93 = por %p91, %p92
      %p94 = scmp.ne.s32.totalorder %s86, %s88
      %p95 = scmp.eq.s32.totalorder %s22, 1
      %p96 = por %p94, %p95
      %p97 = scmp.ne.s32.totalorder %s88, %s89
      %p98 = scmp.eq.s32.totalorder %s22, 0
      %p99 = por %p97, %p98
      %p100 = scmp.ne.s32.totalorder %s88, %s89
      %p101 = scmp.eq.s32.totalorder %s23, 1
      %p102 = por %p100, %p101
      %p104 = scmp.ne.s32.totalorder %s89, %s103
      %p105 = scmp.eq.s32.totalorder %s23, 0
      %p106 = por %p104, %p105
      %s107 = ssub.s32 %s24, %s36
      %s108 = ssub.s32 %s25, %s32
      %s109 = sor.u32 %s107, %s108
      %p110 = scmp.eq.s32.totalorder %s109, 0
      %s112 = sadd.s32 %s111, 1
      %s113 = scalar_select %p110, %s111, %s112
      %p116 = pneg %p110
      %p117 = scmp.eq.s32.totalorder %s17, 1
      %p118 = por %p116, %p117
      %p119 = scmp.ne.s32.totalorder %s111, %s114
      %p120 = scmp.eq.s32.totalorder %s17, 0
      %p121 = por %p119, %p120
      %p122 = scmp.ne.s32.totalorder %s111, %s114
      %p123 = scmp.eq.s32.totalorder %s22, 1
      %p124 = por %p122, %p123
      %p125 = scmp.ne.s32.totalorder %s114, %s115
      %p126 = scmp.eq.s32.totalorder %s22, 0
      %p127 = por %p125, %p126
      %p128 = scmp.ne.s32.totalorder %s114, %s115
      %p129 = scmp.eq.s32.totalorder %s23, 1
      %p130 = por %p128, %p129
      %p132 = scmp.ne.s32.totalorder %s115, %s131
      %p133 = scmp.eq.s32.totalorder %s23, 0
      %p134 = por %p132, %p133
      %p135 = scmp.le.s32.totalorder 1, %s17
      %p136 = scmp.lt.s32.totalorder %s17, 3
      %p137 = pnand %p135, %p136
      %p138 = pneg %p137
      // Predicated region
      $region9: #{tpu_custom_call.1} parent=5 // pred_check
        _
      $region10: #{tpu_custom_call.1} parent=5 // pred_check_branch
        %140 = sbr.rel (%p137) target = $region12
      $region11: #{tpu_custom_call.1} parent=5 // pred_region
        %s141 = ssub.s32 %s17, 1
        // Predicated region
        $region13: #{tpu_custom_call.1} parent=11 // pred_check
          %p142 = pneg %p78
        $region14: #{tpu_custom_call.1} parent=11 // pred_check_branch
          %144 = sbr.rel (%p142) target = $region16
        $region15: #{tpu_custom_call.1} parent=11 // pred_region
          _
        $region16: #{tpu_custom_call.1} parent=11 // pred_fallthru
          _
        // Predicated region
        $region17: #{tpu_custom_call.1} parent=11 // pred_check
          %p145 = pneg %p99
        $region18: #{tpu_custom_call.1} parent=11 // pred_check_branch
          %147 = sbr.rel (%p145) target = $region20
        $region19: #{tpu_custom_call.1} parent=11 // pred_region
          _
        $region20: #{tpu_custom_call.1} parent=11 // pred_fallthru
          _
      $region12: #{tpu_custom_call.1} parent=5 // pred_fallthru
        _
      %p148 = scmp.lt.s32.totalorder %s17, 2
      // Predicated region
      $region21: #{tpu_custom_call.1} parent=5 // pred_check
        %p149 = pneg %p148
      $region22: #{tpu_custom_call.1} parent=5 // pred_check_branch
        %151 = sbr.rel (%p149) target = $region24
      $region23: #{tpu_custom_call.1} parent=5 // pred_region
        // Predicated region
        $region25: #{tpu_custom_call.1} parent=23 // pred_check
          %p152 = pneg %p51
        $region26: #{tpu_custom_call.1} parent=23 // pred_check_branch
          %154 = sbr.rel (%p152) target = $region28
        $region27: #{tpu_custom_call.1} parent=23 // pred_region
          %s155 = sand.u32 %s41, 1
          %s156 = scalar_lea.sflag [#allocation4], %s155
          %s157 = sand.u32 %s41, 1
          %s158 = smul.addr %s157, 64
          %s159 = scalar_lea.vmem [#allocation3], %s158
          %s160 = smul.u32 2, %s25
          %s162 = ssub.s32 1024, 1024
          %163 = vsyncadd %s156, %s162
          %s164 = smul.addr %s24, 8
          %s165 = sadd.s32 %s160, %s164
          %s166 = smul.addr %s165, 128
          %s167 = scalar_lea.hbm %s0, %s166
          %s168 = sshll.u32 %s159, 4
          %s169 = int_to_ptr.vmem [resolvable:$true] %s168
          %174 = dma.hbm_to_vmem [thread:$0]  %s167, 1024, %s169, %s156, 256, 256, 16
        $region28: #{tpu_custom_call.1} parent=23 // pred_fallthru
          _
      $region24: #{tpu_custom_call.1} parent=5 // pred_fallthru
        _
      %p175 = scmp.le.s32.totalorder 1, %s17
      %p176 = scmp.lt.s32.totalorder %s17, 3
      %p177 = pnand %p175, %p176
      %p178 = pneg %p177
      // Predicated region
      $region29: #{tpu_custom_call.1} parent=5 // pred_check
        _
      $region30: #{tpu_custom_call.1} parent=5 // pred_check_branch
        %180 = sbr.rel (%p177) target = $region32
      $region31: #{tpu_custom_call.1} parent=5 // pred_region
        %s181 = ssub.s32 %s17, 1
        %s182 = sand.u32 %s44, 1
        %s183 = scalar_lea.sflag [#allocation4], %s182
        %s184 = sand.u32 %s44, 1
        %s185 = smul.addr %s184, 64
        %s186 = scalar_lea.vmem [#allocation3], %s185
        // Predicated region
        $region33: #{tpu_custom_call.1} parent=31 // pred_check
          %p187 = pneg %p57
        $region34: #{tpu_custom_call.1} parent=31 // pred_check_branch
          %189 = sbr.rel (%p187) target = $region36
        $region35: #{tpu_custom_call.1} parent=31 // pred_region
          %190 = dma.done %s183, 1024
        $region36: #{tpu_custom_call.1} parent=31 // pred_fallthru
          _
        %s191 = sand.u32 %s44, 1
        %s192 = scalar_lea.sflag [#allocation4], %s191
        %s193 = sand.u32 %s44, 1
        %s194 = smul.addr %s193, 64
        %s195 = scalar_lea.vmem [#allocation3], %s194
        %p196 = pneg %p57
        %p197 = pneg %p54
        %p198 = pneg %p78
        %p199 = pneg %p75
        %p200 = pneg %p99
        %p201 = pneg %p96
        %p202 = pneg %p127
        %p203 = pneg %p124
        %s204 = sand.u32 %s114, 1
        %s205 = scalar_lea.sflag [#allocation5], %s204
        %s206 = sand.u32 %s114, 1
        %s207 = smul.addr %s206, 2
        %s208 = scalar_lea.vmem [#allocation6], %s207
        %s209 = smul.u32 2, %s27
        %s210 = smul.u32 2, %s27
        %v211 = vld [vmem:[%s1] sm:$0x1]
        %v212 = vld [vmem:[%s186] sm:$0xff]
        %v213 = vld [vmem:[%s186 + $0x8] sm:$0xff]
        %v214 = vld [vmem:[%s186 + $0x10] sm:$0xff]
        %v215 = vld [vmem:[%s186 + $0x18] sm:$0xff]
        %v216 = vld [vmem:[%s186 + $0x20] sm:$0xff]
        %v217 = vld [vmem:[%s186 + $0x28] sm:$0xff]
        %v218 = vld [vmem:[%s186 + $0x30] sm:$0xff]
        %v219 = vld [vmem:[%s186 + $0x38] sm:$0xff]
        %v220 = vld [vmem:[#allocation2] sm:$0x1]
        %222 = vset.pattern.permute.xlu0 0
        %223 = vperm.xlu0 %222, %v220
        %v224 = vpop.permute.xlu0 %223
        %v226 = vlaneseq
        %v227 = vshrl.u32 %v226, 7
        %v228 = vsub.s32 0, %v227
        %v229 = vrot.slane %v224, %v228
        %vm230 = vcmask 261120
        %v232 = vsel %vm230, %v211, 0
        %234 = vmatprep.subr.mxu0 0.0
        %235 = vmatpush1.msra.mxu0 0.0
        %236 = vmatprep.subr.mxu0 0.0
        %237 = vmatpush1.msra.mxu0 0.0
        %238 = vmatprep.subr.mxu0 0.0
        %239 = vmatpush1.msra.mxu0 0.0
        %240 = vmatprep.subr.mxu0 0.0
        %241 = vmatpush1.msra.mxu0 0.0
        %242 = vmatprep.subr.mxu0 0.0
        %243 = vmatpush1.msra.mxu0 0.0
        %244 = vmatprep.subr.mxu0 0.0
        %245 = vmatpush1.msra.mxu0 0.0
        %246 = vmatprep.subr.mxu0 0.0
        %247 = vmatpush1.msra.mxu0 0.0
        %248 = vmatprep.subr.mxu0 0.0
        %249 = vmatpush1.msra.mxu0 0.0
        %250 = vmatprep.subr.mxu0 0.0
        %251 = vmatpush1.msra.mxu0 0.0
        %252 = vmatprep.subr.mxu0 0.0
        %253 = vmatpush1.msra.mxu0 0.0
        %254 = vmatprep.subr.mxu0 0.0
        %255 = vmatpush1.msra.mxu0 0.0
        %256 = vmatprep.subr.mxu0 0.0
        %257 = vmatpush1.msra.mxu0 0.0
        %258 = vmatprep.subr.mxu0 %v219
        %259 = vmatpush1.msra.mxu0 %v218
        %260 = vmatprep.subr.mxu0 %v217
        %261 = vmatpush1.msra.mxu0 %v216
        %262 = vmatprep.subr.mxu0 %v215
        %263 = vmatpush1.msra.mxu0 %v214
        %264 = vmatprep.subr.mxu0 %v213
        %265 = vmatpush1.msra.mxu0 %v212
        %266 = vmatprep.subr.mxu0 0.0
        %267 = vmatpush2.msra.mxu0 0.0
        %268 = vmatprep.subr.mxu0 0.0
        %269 = vmatpush2.msra.mxu0 0.0
        %270 = vmatprep.subr.mxu0 0.0
        %271 = vmatpush2.msra.mxu0 0.0
        %272 = vmatprep.subr.mxu0 0.0
        %273 = vmatpush2.msra.mxu0 0.0
        %274 = vmatprep.subr.mxu0 0.0
        %275 = vmatpush2.msra.mxu0 0.0
        %276 = vmatprep.subr.mxu0 0.0
        %277 = vmatpush2.msra.mxu0 0.0
        %278 = vmatprep.subr.mxu0 0.0
        %279 = vmatpush2.msra.mxu0 0.0
        %280 = vmatprep.subr.mxu0 0.0
        %281 = vmatpush2.msra.mxu0 0.0
        %282 = vmatprep.subr.mxu0 0.0
        %283 = vmatpush2.msra.mxu0 0.0
        %284 = vmatprep.subr.mxu0 0.0
        %285 = vmatpush2.msra.mxu0 0.0
        %286 = vmatprep.subr.mxu0 0.0
        %287 = vmatpush2.msra.mxu0 0.0
        %288 = vmatprep.subr.mxu0 0.0
        %289 = vmatpush2.msra.mxu0 0.0
        %290 = vmatprep.subr.mxu0 0.0
        %291 = vmatpush2.msra.mxu0 0.0
        %292 = vmatprep.subr.mxu0 0.0
        %293 = vmatpush2.msra.mxu0 0.0
        %294 = vmatprep.subr.mxu0 0.0
        %295 = vmatpush2.msra.mxu0 0.0
        %296 = vmatprep.subr.mxu0 0.0
        %297 = vmatpush2.msra.mxu0 0.0
        %298 = vmatprep.mubr.f32.mxu0 0.0
        %299 = vmatmul.mubr.f32.gmra.mxu0 %v232
        %v300 = vpop.f32.mrf.mxu0
        %v301 = vadd.f32 %v229, %v300
        %v302 = vpop.f32.mrf.mxu0
        %v303 = vadd.f32 %v229, %v302
        %304 = vdwg.mxu0
        %v307 = vcombine.low %v301, %v303
        %v309 = vunpack.c.l.s4 1966171168
        %v310 = vunpack.c.0.s8 %v309
        %v311 = vlaneseq
        %v312 = vshrl.u32 %v311, 7
        %v313 = vsub.s32 %v310, %v312
        %v314 = vrot.slane %v307, %v313
        %v316 = vunpack.c.l.s4 1966171168
        %v317 = vunpack.c.0.s8 %v316
        %v318 = vlaneseq
        %v319 = vshrl.u32 %v318, 7
        %v320 = vsub.s32 %v317, %v319
        %v321 = vrot.slane %v314, %v320
        %v323 = vlaneseq
        %vm324 = vcmp.ge.s32.totalorder %v323, 0
        %vm325 = vcmp.lt.s32.totalorder %v323, 256
        %vm326 = vmand %vm324, %vm325
        %327 = vst.msk [vmem:[%s208] sm:$0x3] %vm326, %v321
        %s328 = sand.u32 %s114, 1
        %s329 = scalar_lea.sflag [#allocation5], %s328
        %s330 = sand.u32 %s114, 1
        %s331 = smul.addr %s330, 2
        %s332 = scalar_lea.vmem [#allocation6], %s331
        // Predicated region
        $region37: #{tpu_custom_call.1} parent=31 // pred_check
          %p333 = pneg %p124
        $region38: #{tpu_custom_call.1} parent=31 // pred_check_branch
          %335 = sbr.rel (%p333) target = $region40
        $region39: #{tpu_custom_call.1} parent=31 // pred_region
          %s336 = smul.u32 2, %s27
          %s338 = ssub.s32 32, 32
          %339 = vsyncadd %s329, %s338
          %s340 = smul.addr %s26, 2
          %s341 = sadd.s32 %s336, %s340
          %s342 = smul.addr %s341, 16
          %s343 = scalar_lea.hbm %s3, %s342
          %s345 = sshll.u32 %s332, 4
          %s346 = int_to_ptr.vmem [resolvable:$true] %s345
          %348 = dma.vmem_to_hbm [thread:$0]  %s346, 32, %s343, %s329
        $region40: #{tpu_custom_call.1} parent=31 // pred_fallthru
          _
      $region32: #{tpu_custom_call.1} parent=5 // pred_fallthru
        _
      %p349 = scmp.le.s32.totalorder 2, %s17
      // Predicated region
      $region41: #{tpu_custom_call.1} parent=5 // pred_check
        %p350 = pneg %p349
      $region42: #{tpu_custom_call.1} parent=5 // pred_check_branch
        %352 = sbr.rel (%p350) target = $region44
      $region43: #{tpu_custom_call.1} parent=5 // pred_region
        %s353 = ssub.s32 %s17, 2
        // Predicated region
        $region45: #{tpu_custom_call.1} parent=43 // pred_check
          %p354 = pneg %p130
        $region46: #{tpu_custom_call.1} parent=43 // pred_check_branch
          %356 = sbr.rel (%p354) target = $region48
        $region47: #{tpu_custom_call.1} parent=43 // pred_region
          %s357 = sand.u32 %s115, 1
          %s358 = scalar_lea.sflag [#allocation5], %s357
          %s359 = sand.u32 %s115, 1
          %s360 = smul.addr %s359, 2
          %s361 = scalar_lea.vmem [#allocation6], %s360
          %362 = dma.done %s358, 32
        $region48: #{tpu_custom_call.1} parent=43 // pred_fallthru
          _
      $region44: #{tpu_custom_call.1} parent=5 // pred_fallthru
        _
    $region6: #{tpu_custom_call.1} parent=1 // loop_footer
      %s21 = sadd.s32 1, %s17
    $region7: #{tpu_custom_call.1} parent=1 // loop_footer_branch
      %16 = sbr.rel target = $region3
    $region8: #{tpu_custom_call.1} parent=1 // loop_exit
      _
    %363 = vsyncpa [#allocation4], 1
    %s364 = scalar_lea.sflag [#allocation4], 1
    %365 = vsyncpa %s364, 1
    %366 = vsyncpa [#allocation5], 1
    %s367 = scalar_lea.sflag [#allocation5], 1
    %368 = vsyncpa %s367, 1

</llo_original>
